<compile_context>
chip_gen: v6e
topology: v6e:2x2x1
jax: 0.10.0
libtpu: 0.0.40
codegen_flags: <defaults>
</compile_context>

<pallas_src>
import functools

import jax
import jax.numpy as jnp
from jax.experimental import pallas as pl
from jax.experimental.pallas import tpu as pltpu


def _round_up(x, m):
    return (x + m - 1) // m * m


def _pick_tile(n, candidates):
    for c in candidates:
        if n % c == 0:
            return c
    return n  # n is always a multiple of 128 here, so 128 always matches.


# ----------------------------------------------------------------------------
# Kernel 1: tiled batched matmul, f32 accumulation directly in the output block
#   out[r] = [relu]( A[r] @ B[r or shared] )
# Grid: (R, rows//tm, K//tk); reduction axis last ("arbitrary").
# The output block index is constant over k, so it stays resident in VMEM and
# doubles as the accumulator (no scratch, no finalize copy).
# ----------------------------------------------------------------------------
def _gcn_hop_kernel(a_ref, b_ref, o_ref, *, apply_relu):
    k = pl.program_id(2)

    @pl.when(k == 0)
    def _():
        o_ref[...] = jnp.zeros_like(o_ref)

    o_ref[...] += jnp.dot(a_ref[...], b_ref[...],
                          preferred_element_type=jnp.float32)

    if apply_relu:
        @pl.when(k == pl.num_programs(2) - 1)
        def _():
            o_ref[...] = jnp.maximum(o_ref[...], 0.0)


def gcn_hop(a_stack, b, *, apply_relu=False):
    """a_stack: (R, M, K) bf16/f32.  b: (K, H) shared or (R, K, H) per-relation.
    Returns (R, M, H) f32 (MXU accumulation in f32)."""
    r, m, kdim = a_stack.shape
    hp = b.shape[-1]
    b_per_rel = (b.ndim == 3)

    tm = _pick_tile(m, (1024, 512, 256, 128))
    tk = _pick_tile(kdim, (2048, 1024, 512, 256, 128))
    grid = (r, m // tm, kdim // tk)

    in_specs = [pl.BlockSpec((None, tm, tk), lambda rr, i, k: (rr, i, k))]
    operands = [a_stack]
    if b_per_rel:
        in_specs.append(pl.BlockSpec((None, tk, hp), lambda rr, i, k: (rr, k, 0)))
    else:
        in_specs.append(pl.BlockSpec((tk, hp), lambda rr, i, k: (k, 0)))
    operands.append(b)

    # Explicit VMEM budget for the double-buffered blocks (+2x headroom), clamped
    # to stay inside v7x's 64 MiB physical VMEM; avoids silently hitting the
    # 16/32 MiB default scoped limits when tiles are large.
    a_bytes = tm * tk * a_stack.dtype.itemsize
    b_bytes = tk * hp * b.dtype.itemsize
    o_bytes = tm * hp * 4
    vmem_needed = 2 * (a_bytes + b_bytes + o_bytes)
    vmem_limit = int(min(64 << 20, max(2 * vmem_needed, 16 << 20)))

    cost = pl.CostEstimate(
        flops=2 * r * m * kdim * hp,
        transcendentals=0,
        bytes_accessed=int(a_stack.size * a_stack.dtype.itemsize
                           + b.size * b.dtype.itemsize
                           + r * m * hp * 4),
    )

    kernel = functools.partial(_gcn_hop_kernel, apply_relu=apply_relu)
    return pl.pallas_call(
        kernel,
        out_shape=jax.ShapeDtypeStruct((r, m, hp), jnp.float32),
        grid=grid,
        in_specs=in_specs,
        out_specs=pl.BlockSpec((None, tm, hp), lambda rr, i, k: (rr, i, 0)),
        compiler_params=pltpu.CompilerParams(
            dimension_semantics=("parallel", "parallel", "arbitrary"),
            vmem_limit_bytes=vmem_limit),
        cost_estimate=cost,
    )(*operands)


# ----------------------------------------------------------------------------
# Kernel 2: EdgeGenerator.forward, batched over relations (grid=(R,)).
#   Reassociated:  (A @ B.T) @ W  ->  A @ (B.T @ W)
#   inputs (pre-transposed / zero-padded in the wrapper):
#     at : (R, Hp, Mp) = embed[syn_idx].T   per relation
#     bt : (R, Hp, Mp) = embed[tail_idx].T  per relation
#     w  : (R, 1,  Mp) = edge weight row
#   c = B.T @ W (lane reduce, XLU) -> (Hp, 1);  t = A @ c via VPU mul + sublane
#   reduce -> lane-dense (1, Mp);  score = sigmoid(log(max(t, eps)) + 1e-5).
# ----------------------------------------------------------------------------
def _edge_score_kernel(at_ref, bt_ref, w_ref, o_ref):
    c = jnp.sum(bt_ref[...] * w_ref[...], axis=1, keepdims=True)   # (Hp, 1)
    t = jnp.sum(at_ref[...] * c, axis=0, keepdims=True)            # (1, Mp)
    # Clamp: reference log() is NaN/-inf for non-positive dot products.
    t = jnp.maximum(t, 1e-12)
    o_ref[...] = jax.nn.sigmoid(jnp.log(t) + 1e-5).astype(o_ref.dtype)


def edge_scores(at_stack, bt_stack, w_stack):
    r, hp, mp = at_stack.shape
    return pl.pallas_call(
        _edge_score_kernel,
        out_shape=jax.ShapeDtypeStruct((r, 1, mp), jnp.float32),
        grid=(r,),
        in_specs=[
            pl.BlockSpec((None, hp, mp), lambda i: (i, 0, 0)),
            pl.BlockSpec((None, hp, mp), lambda i: (i, 0, 0)),
            pl.BlockSpec((None, 1, mp), lambda i: (i, 0, 0)),
        ],
        out_specs=pl.BlockSpec((None, 1, mp), lambda i: (i, 0, 0)),
        compiler_params=pltpu.CompilerParams(
            dimension_semantics=("parallel",)),
    )(at_stack, bt_stack, w_stack)


# ----------------------------------------------------------------------------
# dSmote forward (JAX glue around the Pallas kernels)
# ----------------------------------------------------------------------------
def dsmote_forward(feature, adj_list, syn_corr_tail_list, edge_weight_list,
                   gcn_w1, gcn_w2, threshold=0.7):
    n, fea = feature.shape
    hid = gcn_w1.shape[1]
    r = len(adj_list)

    np_ = _round_up(n, 128)
    fp = _round_up(fea, 128)
    hp = _round_up(hid, 128)

    # Zero-pad to lane-dense shapes; streamed operands are bf16 (f32 accumulation).
    # NOTE: bf16 streaming shifts embeddings ~1e-2 relative vs the f32 reference;
    # threshold=0.7 edge decisions near the cut may flip.
    x_pad = jnp.pad(feature.astype(jnp.float32),
                    ((0, np_ - n), (0, fp - fea))).astype(jnp.bfloat16)
    w1_pad = jnp.pad(gcn_w1.astype(jnp.float32),
                     ((0, fp - fea), (0, hp - hid))).astype(jnp.bfloat16)
    w2_pad = jnp.pad(gcn_w2.astype(jnp.float32),
                     ((0, hp - hid), (0, hp - hid))).astype(jnp.bfloat16)
    adj_stack = jnp.pad(jnp.stack(adj_list).astype(jnp.float32),
                        ((0, 0), (0, np_ - n), (0, np_ - n))).astype(jnp.bfloat16)

    # TODO(synk): DynamicSmote feature synthesis not defined in the source; identity,
    # so X @ W1 is shared across relations and hoisted out of the adjacency loop.
    xw1 = gcn_hop(x_pad[None], w1_pad)[0].astype(jnp.bfloat16)        # (Np, Hp)
    h1 = gcn_hop(adj_stack, xw1, apply_relu=True)                     # (R, Np, Hp) f32
    # Reassociated layer 2: (adj @ h1) @ W2 == adj @ (h1 @ W2).
    h1w2 = gcn_hop(h1.astype(jnp.bfloat16), w2_pad).astype(jnp.bfloat16)
    h2 = gcn_hop(adj_stack, h1w2)                                     # (R, Np, Hp) f32

    embed_ds = [h2[i, :n, :hid] for i in range(r)]

    # EdgeGenerator: gather + transpose in JAX (layout plumbing), one batched
    # Pallas call over all relations for the scores.
    m_list = [idx.shape[0] for idx in syn_corr_tail_list]
    mp = _round_up(max(m_list), 128)
    at_rows, bt_rows, w_rows = [], [], []
    for i in range(r):
        idx = syn_corr_tail_list[i]
        m = m_list[i]
        e = h2[i]                                  # (Np, Hp); padded cols are zero
        at_rows.append(jnp.pad(e[idx[:, 0], :].T, ((0, 0), (0, mp - m))))
        bt_rows.append(jnp.pad(e[idx[:, 1], :].T, ((0, 0), (0, mp - m))))
        w_rows.append(jnp.pad(edge_weight_list[i][:, 0][None, :],
                              ((0, 0), (0, mp - m))))
    score_rows = edge_scores(jnp.stack(at_rows), jnp.stack(bt_rows),
                             jnp.stack(w_rows))    # (R, 1, Mp)

    adj_new_list, edge_score_list = [], []
    for i, adj in enumerate(adj_list):
        idx = syn_corr_tail_list[i]
        m = m_list[i]
        score = score_rows[i, 0, :m][:, None]      # (M, 1)
        edge_score_list.append(score)

        # get_new_adj: thresholded scatter of new edges into the dense adjacency.
        # TODO(synk): duplicate (syn, tail) pairs have unspecified write order; the
        # reference also only sets adj[s, t] (not symmetrized).
        mask = score[:, 0] >= threshold
        new_vals = jnp.where(mask, 1.0, adj[idx[:, 0], idx[:, 1]])
        adj_new_list.append(adj.at[idx[:, 0], idx[:, 1]].set(new_vals))

    return embed_ds, adj_new_list, edge_score_list


# ----------------------------------------------------------------------------
if __name__ == "__main__":
    key = jax.random.PRNGKey(0)
    N, FEA, HID = 64, 32, 32          # nodes, fea_dim, hid_dim
    M = 16                            # synthetic (syn, tail) pairs per relation
    R = 2                             # number of relations

    k_feat, k_adj, k_w1, k_w2, k_pairs, k_ew = jax.random.split(key, 6)

    # Non-negative features / weights keep log() finite in the demo.
    feature = jnp.abs(jax.random.normal(k_feat, (N, FEA), dtype=jnp.float32))

    adj_list = []
    adj_keys = jax.random.split(k_adj, R)
    for rel in range(R):
        a = (jax.random.uniform(adj_keys[rel], (N, N)) > 0.9).astype(jnp.float32)
        a = jnp.maximum(a, a.T) + jnp.eye(N, dtype=jnp.float32)   # symmetric + self loops
        a = a / jnp.sum(a, axis=1, keepdims=True)                 # row-normalize
        adj_list.append(a)

    pair_keys = jax.random.split(k_pairs, R)
    syn_corr_tail_list = [
        jax.random.randint(pair_keys[rel], (M, 2), 0, N, dtype=jnp.int32)
        for rel in range(R)
    ]

    ew_keys = jax.random.split(k_ew, R)
    edge_weight_list = [
        jnp.abs(jax.random.uniform(ew_keys[rel], (M, 1), dtype=jnp.float32,
                                   minval=-1.0, maxval=1.0)) for rel in range(R)
    ]

    gcn_w1 = jnp.abs(jax.random.normal(k_w1, (FEA, HID), dtype=jnp.float32)) * 0.1
    gcn_w2 = jnp.abs(jax.random.normal(k_w2, (HID, HID), dtype=jnp.float32)) * 0.1

    embed_ds, adj_new_list, edge_score_list = dsmote_forward(
        feature, adj_list, syn_corr_tail_list, edge_weight_list, gcn_w1, gcn_w2)

    for x in embed_ds + adj_new_list + edge_score_list:
        jax.block_until_ready(x)

    print("KERNEL_OK")
</pallas_src>

<mosaic_0001>
module attributes {stable_mosaic.version = 11 : i64} {
  func.func @_gcn_hop_kernel(%arg0: i32, %arg1: i32, %arg2: i32, %arg3: memref<1x128x128xbf16, #tpu.memory_space<vmem>>, %arg4: memref<128x128xbf16, #tpu.memory_space<vmem>>, %arg5: memref<1x128x128xf32, #tpu.memory_space<vmem>>) attributes {dimension_semantics = [#tpu.dimension_semantics<parallel>, #tpu.dimension_semantics<parallel>, #tpu.dimension_semantics<arbitrary>], iteration_bounds = array<i64: 1, 1, 1>, scalar_prefetch = 0 : i64, scratch_operands = 0 : i64, tpu.core_type = #tpu.core_type<tc>, window_params = [{transform_indices = @transform_0, window_bounds = array<i64: 1, 128, 128>}, {transform_indices = @transform_1, window_bounds = array<i64: 128, 128>}, {transform_indices = @transform_2, window_bounds = array<i64: 1, 128, 128>}]} {
    %c0_i32 = arith.constant 0 : i32
    %0 = arith.cmpi eq, %arg2, %c0_i32 : i32
    %1 = arith.extui %0 : i1 to i32
    %c0_i32_0 = arith.constant 0 : i32
    %2 = arith.cmpi ne, %1, %c0_i32_0 : i32
    scf.if %2 {
      %cst_11 = arith.constant 0.000000e+00 : f32
      %13 = vector.broadcast %cst_11 : f32 to vector<128x128xf32>
      %c0_12 = arith.constant 0 : index
      %c0_13 = arith.constant 0 : index
      %c0_14 = arith.constant 0 : index
      %14 = vector.load %arg5[%c0_12, %c0_13, %c0_14] : memref<1x128x128xf32, #tpu.memory_space<vmem>>, vector<1x128x128xf32>
      %15 = vector.shape_cast %14 : vector<1x128x128xf32> to vector<128x128xf32>
      %16 = vector.shape_cast %13 : vector<128x128xf32> to vector<1x128x128xf32>
      tpu.vector_store %arg5[%c0_12, %c0_13, %c0_14], %16 {strides = array<i32>} : memref<1x128x128xf32, #tpu.memory_space<vmem>>, vector<1x128x128xf32>,
    } else {
    }
    %c0 = arith.constant 0 : index
    %c0_1 = arith.constant 0 : index
    %c0_2 = arith.constant 0 : index
    %3 = vector.load %arg5[%c0, %c0_1, %c0_2] : memref<1x128x128xf32, #tpu.memory_space<vmem>>, vector<1x128x128xf32>
    %4 = vector.shape_cast %3 : vector<1x128x128xf32> to vector<128x128xf32>
    %c0_3 = arith.constant 0 : index
    %c0_4 = arith.constant 0 : index
    %c0_5 = arith.constant 0 : index
    %5 = vector.load %arg3[%c0_3, %c0_4, %c0_5] : memref<1x128x128xbf16, #tpu.memory_space<vmem>>, vector<1x128x128xbf16>
    %6 = vector.shape_cast %5 : vector<1x128x128xbf16> to vector<128x128xbf16>
    %c0_6 = arith.constant 0 : index
    %c0_7 = arith.constant 0 : index
    %7 = vector.load %arg4[%c0_6, %c0_7] : memref<128x128xbf16, #tpu.memory_space<vmem>>, vector<128x128xbf16>
    %cst = arith.constant dense<0.000000e+00> : vector<128x128xf32>
    %8 = tpu.matmul %6, %7, %cst {dimension_numbers = #tpu.dot_dimension_numbers<[1], [0], [0], [1], [0, 0, 1, 1], [], []>} : vector<128x128xbf16>, vector<128x128xbf16>, vector<128x128xf32> -> vector<128x128xf32>
    %9 = arith.addf %4, %8 : vector<128x128xf32>
    %c0_8 = arith.constant 0 : index
    %c0_9 = arith.constant 0 : index
    %c0_10 = arith.constant 0 : index
    %10 = vector.load %arg5[%c0_8, %c0_9, %c0_10] : memref<1x128x128xf32, #tpu.memory_space<vmem>>, vector<1x128x128xf32>
    %11 = vector.shape_cast %10 : vector<1x128x128xf32> to vector<128x128xf32>
    %12 = vector.shape_cast %9 : vector<128x128xf32> to vector<1x128x128xf32>
    tpu.vector_store %arg5[%c0_8, %c0_9, %c0_10], %12 {strides = array<i32>} : memref<1x128x128xf32, #tpu.memory_space<vmem>>, vector<1x128x128xf32>,
    return
  }
  func.func @transform_0(%arg0: i32, %arg1: i32, %arg2: i32) -> (i32, i32, i32) {
    %c0_i32 = arith.constant 0 : i32
    return %arg0, %arg1, %arg2 : i32, i32, i32
  }
  func.func @transform_1(%arg0: i32, %arg1: i32, %arg2: i32) -> (i32, i32) {
    %c0_i32 = arith.constant 0 : i32
    %c0_i32_0 = arith.constant 0 : i32
    return %arg2, %c0_i32 : i32, i32
  }
  func.func @transform_2(%arg0: i32, %arg1: i32, %arg2: i32) -> (i32, i32, i32) {
    %c0_i32 = arith.constant 0 : i32
    %c0_i32_0 = arith.constant 0 : i32
    return %arg0, %arg1, %c0_i32 : i32, i32, i32
  }
}

</mosaic_0001>

<llo_original>
// kernel: tpu_custom_call.1
$region0: #{tpu_custom_call.1}
  #allocation0 [shape = 'u32[]', space=smem, size = 0x4, offset = 0x4, fixed_abs, tag = 'smem constant byte address 0x4 - core index']
  #allocation1 [shape = 'u32[144,128]{1,0:T(1,128)}', space=vmem, size = 0x12000, scoped, tag = 'internal scratch']
  %s0 = inlined_call_operand.hbm [shape: bf16[1,128,128], index: 0, kind: input, shape index: {}]
  %s1 = inlined_call_operand.hbm [shape: bf16[128,128], index: 1, kind: input, shape index: {}]
  %s2 = inlined_call_operand.hbm [shape: f32[1,128,128], index: 2, kind: output, shape index: {}]
  %s3 = sld [smem:[#allocation0]]
  $region30: #{tpu_custom_call.1} parent=0
    _
  %s5 = ssub.s32 1, %s3
  %s6 = scalar_select 0, %s5, %s3
  $region1: #{tpu_custom_call.1} parent=0
    #allocation2 [shape = 'u8[32768]{0}', space=vmem, size = 0x8000, scoped, tag = 'input window, operand 0, single buffered']
    #allocation3 [shape = 's32[1]{0}', space=sflag, size = 0x4, scoped, tag = 'scoped memory for tpu_custom_call.1']
    #allocation4 [shape = 's32[1]{0}', space=sflag, size = 0x4, scoped, tag = 'scoped memory for tpu_custom_call.1']
    #allocation5 [shape = 'u8[32768]{0}', space=vmem, size = 0x8000, scoped, tag = 'input window, operand 1, single buffered']
    #allocation6 [shape = 's32[1]{0}', space=sflag, size = 0x4, scoped, tag = 'scoped memory for tpu_custom_call.1']
    #allocation7 [shape = 'u8[65536]{0}', space=vmem, size = 0x10000, scoped, tag = 'output window, operand 0, single buffered']
    %7 = vsyncpa [#allocation3], 0
    %8 = vsyncpa [#allocation6], 0
    %9 = vsyncpa [#allocation4], 0
    // Predicated region
    $region2: #{tpu_custom_call.1} parent=1 // pred_check
      _
    $region3: #{tpu_custom_call.1} parent=1 // pred_check_branch
      %11 = sbr.rel (0) target = $region5
    $region4: #{tpu_custom_call.1} parent=1 // pred_region
      %s13 = ssub.s32 1024, 1024
      %14 = vsyncadd [#allocation3], %s13
      %s15 = sshll.u32 [#allocation2], 4
      %s16 = int_to_ptr.vmem [resolvable:$true] %s15
      %21 = dma.hbm_to_vmem [thread:$0]  %s0, 1024, %s16, [#allocation3], 64, 64, 4
    $region5: #{tpu_custom_call.1} parent=1 // pred_fallthru
      _
    // Predicated region
    $region6: #{tpu_custom_call.1} parent=1 // pred_check
      _
    $region7: #{tpu_custom_call.1} parent=1 // pred_check_branch
      %23 = sbr.rel (0) target = $region9
    $region8: #{tpu_custom_call.1} parent=1 // pred_region
      %s25 = ssub.s32 1024, 1024
      %26 = vsyncadd [#allocation6], %s25
      %s27 = sshll.u32 [#allocation5], 4
      %s28 = int_to_ptr.vmem [resolvable:$true] %s27
      %33 = dma.hbm_to_vmem [thread:$0]  %s1, 1024, %s28, [#allocation6], 64, 64, 4
    $region9: #{tpu_custom_call.1} parent=1 // pred_fallthru
      _
    // Predicated region
    $region10: #{tpu_custom_call.1} parent=1 // pred_check
      _
    $region11: #{tpu_custom_call.1} parent=1 // pred_check_branch
      %35 = sbr.rel (0) target = $region13
    $region12: #{tpu_custom_call.1} parent=1 // pred_region
      %36 = dma.done [#allocation3], 1024
    $region13: #{tpu_custom_call.1} parent=1 // pred_fallthru
      _
    // Predicated region
    $region14: #{tpu_custom_call.1} parent=1 // pred_check
      _
    $region15: #{tpu_custom_call.1} parent=1 // pred_check_branch
      %38 = sbr.rel (0) target = $region17
    $region16: #{tpu_custom_call.1} parent=1 // pred_region
      %39 = dma.done [#allocation6], 1024
    $region17: #{tpu_custom_call.1} parent=1 // pred_fallthru
      _
    %p41 = scmp.eq.s32.totalorder 0, 0
    // Predicated region
    $region18: #{tpu_custom_call.1} parent=1 // pred_check
      %p42 = pneg %p41
    $region19: #{tpu_custom_call.1} parent=1 // pred_check_branch
      %44 = sbr.rel (%p42) target = $region21
    $region20: #{tpu_custom_call.1} parent=1 // pred_region
      %45 = vst [vmem:[#allocation7] sm:$0xff] 0.0
      %46 = vst [vmem:[#allocation7 + $0x8] sm:$0xff] 0.0
      %47 = vst [vmem:[#allocation7 + $0x10] sm:$0xff] 0.0
      %48 = vst [vmem:[#allocation7 + $0x18] sm:$0xff] 0.0
      %49 = vst [vmem:[#allocation7 + $0x20] sm:$0xff] 0.0
      %50 = vst [vmem:[#allocation7 + $0x28] sm:$0xff] 0.0
      %51 = vst [vmem:[#allocation7 + $0x30] sm:$0xff] 0.0
      %52 = vst [vmem:[#allocation7 + $0x38] sm:$0xff] 0.0
      %53 = vst [vmem:[#allocation7 + $0x40] sm:$0xff] 0.0
      %54 = vst [vmem:[#allocation7 + $0x48] sm:$0xff] 0.0
      %55 = vst [vmem:[#allocation7 + $0x50] sm:$0xff] 0.0
      %56 = vst [vmem:[#allocation7 + $0x58] sm:$0xff] 0.0
      %57 = vst [vmem:[#allocation7 + $0x60] sm:$0xff] 0.0
      %58 = vst [vmem:[#allocation7 + $0x68] sm:$0xff] 0.0
      %59 = vst [vmem:[#allocation7 + $0x70] sm:$0xff] 0.0
      %60 = vst [vmem:[#allocation7 + $0x78] sm:$0xff] 0.0
    $region21: #{tpu_custom_call.1} parent=1 // pred_fallthru
      _
    %v61 = vld [vmem:[#allocation7] sm:$0xff]
    %v62 = vld [vmem:[#allocation7 + $0x8] sm:$0xff]
    %v63 = vld [vmem:[#allocation7 + $0x10] sm:$0xff]
    %v64 = vld [vmem:[#allocation7 + $0x18] sm:$0xff]
    %v65 = vld [vmem:[#allocation7 + $0x20] sm:$0xff]
    %v66 = vld [vmem:[#allocation7 + $0x28] sm:$0xff]
    %v67 = vld [vmem:[#allocation7 + $0x30] sm:$0xff]
    %v68 = vld [vmem:[#allocation7 + $0x38] sm:$0xff]
    %v69 = vld [vmem:[#allocation7 + $0x40] sm:$0xff]
    %v70 = vld [vmem:[#allocation7 + $0x48] sm:$0xff]
    %v71 = vld [vmem:[#allocation7 + $0x50] sm:$0xff]
    %v72 = vld [vmem:[#allocation7 + $0x58] sm:$0xff]
    %v73 = vld [vmem:[#allocation7 + $0x60] sm:$0xff]
    %v74 = vld [vmem:[#allocation7 + $0x68] sm:$0xff]
    %v75 = vld [vmem:[#allocation7 + $0x70] sm:$0xff]
    %v76 = vld [vmem:[#allocation7 + $0x78] sm:$0xff]
    %v77 = vld [vmem:[#allocation2] sm:$0xf]
    %v78 = vld [vmem:[#allocation2 + $0x4] sm:$0xf]
    %v79 = vld [vmem:[#allocation2 + $0x8] sm:$0xf]
    %v80 = vld [vmem:[#allocation2 + $0xc] sm:$0xf]
    %v81 = vld [vmem:[#allocation2 + $0x10] sm:$0xf]
    %v82 = vld [vmem:[#allocation2 + $0x14] sm:$0xf]
    %v83 = vld [vmem:[#allocation2 + $0x18] sm:$0xf]
    %v84 = vld [vmem:[#allocation2 + $0x1c] sm:$0xf]
    %v85 = vld [vmem:[#allocation2 + $0x20] sm:$0xf]
    %v86 = vld [vmem:[#allocation2 + $0x24] sm:$0xf]
    %v87 = vld [vmem:[#allocation2 + $0x28] sm:$0xf]
    %v88 = vld [vmem:[#allocation2 + $0x2c] sm:$0xf]
    %v89 = vld [vmem:[#allocation2 + $0x30] sm:$0xf]
    %v90 = vld [vmem:[#allocation2 + $0x34] sm:$0xf]
    %v91 = vld [vmem:[#allocation2 + $0x38] sm:$0xf]
    %v92 = vld [vmem:[#allocation2 + $0x3c] sm:$0xf]
    %v93 = vld [vmem:[#allocation5] sm:$0xf]
    %v94 = vld [vmem:[#allocation5 + $0x4] sm:$0xf]
    %v95 = vld [vmem:[#allocation5 + $0x8] sm:$0xf]
    %v96 = vld [vmem:[#allocation5 + $0xc] sm:$0xf]
    %v97 = vld [vmem:[#allocation5 + $0x10] sm:$0xf]
    %v98 = vld [vmem:[#allocation5 + $0x14] sm:$0xf]
    %v99 = vld [vmem:[#allocation5 + $0x18] sm:$0xf]
    %v100 = vld [vmem:[#allocation5 + $0x1c] sm:$0xf]
    %v101 = vld [vmem:[#allocation5 + $0x20] sm:$0xf]
    %v102 = vld [vmem:[#allocation5 + $0x24] sm:$0xf]
    %v103 = vld [vmem:[#allocation5 + $0x28] sm:$0xf]
    %v104 = vld [vmem:[#allocation5 + $0x2c] sm:$0xf]
    %v105 = vld [vmem:[#allocation5 + $0x30] sm:$0xf]
    %v106 = vld [vmem:[#allocation5 + $0x34] sm:$0xf]
    %v107 = vld [vmem:[#allocation5 + $0x38] sm:$0xf]
    %v108 = vld [vmem:[#allocation5 + $0x3c] sm:$0xf]
    %v125 = vunpack.c.l.b16 %v77
    %v126 = vunpack.c.l.b16 %v78
    %v127 = vunpack.c.l.b16 %v79
    %v128 = vunpack.c.l.b16 %v80
    %v129 = vunpack.c.l.b16 %v81
    %v130 = vunpack.c.l.b16 %v82
    %v131 = vunpack.c.l.b16 %v83
    %v132 = vunpack.c.l.b16 %v84
    %v133 = vunpack.c.l.b16 %v85
    %v134 = vunpack.c.l.b16 %v86
    %v135 = vunpack.c.l.b16 %v87
    %v136 = vunpack.c.l.b16 %v88
    %v137 = vunpack.c.l.b16 %v89
    %v138 = vunpack.c.l.b16 %v90
    %v139 = vunpack.c.l.b16 %v91
    %v140 = vunpack.c.l.b16 %v92
    %v141 = vpack.c.b16 %v126, %v125
    %v142 = vpack.c.b16 %v128, %v127
    %v143 = vpack.c.b16 %v130, %v129
    %v144 = vpack.c.b16 %v132, %v131
    %v145 = vpack.c.b16 %v134, %v133
    %v146 = vpack.c.b16 %v136, %v135
    %v147 = vpack.c.b16 %v138, %v137
    %v148 = vpack.c.b16 %v140, %v139
    %v173 = vunpack.c.l.b16 %v93
    %v174 = vunpack.c.l.b16 %v94
    %v175 = vunpack.c.l.b16 %v95
    %v176 = vunpack.c.l.b16 %v96
    %v177 = vunpack.c.l.b16 %v97
    %v178 = vunpack.c.l.b16 %v98
    %v179 = vunpack.c.l.b16 %v99
    %v180 = vunpack.c.l.b16 %v100
    %v181 = vunpack.c.l.b16 %v101
    %v182 = vunpack.c.l.b16 %v102
    %v183 = vunpack.c.l.b16 %v103
    %v184 = vunpack.c.l.b16 %v104
    %v185 = vunpack.c.l.b16 %v105
    %v186 = vunpack.c.l.b16 %v106
    %v187 = vunpack.c.l.b16 %v107
    %v188 = vunpack.c.l.b16 %v108
    %v189 = vpack.c.b16 %v174, %v173
    %v190 = vpack.c.b16 %v176, %v175
    %v191 = vpack.c.b16 %v178, %v177
    %v192 = vpack.c.b16 %v180, %v179
    %v193 = vpack.c.b16 %v182, %v181
    %v194 = vpack.c.b16 %v184, %v183
    %v195 = vpack.c.b16 %v186, %v185
    %v196 = vpack.c.b16 %v188, %v187
    %205 = vmatprep.subr.bf16.mxu0 0
    %206 = vmatpush1.bf16.msra.mxu0 %v196
    %207 = vmatprep.subr.bf16.mxu0 0
    %208 = vmatpush1.bf16.msra.mxu0 %v195
    %209 = vmatprep.subr.bf16.mxu0 0
    %210 = vmatpush1.bf16.msra.mxu0 %v194
    %211 = vmatprep.subr.bf16.mxu0 0
    %212 = vmatpush1.bf16.msra.mxu0 %v193
    %213 = vmatprep.subr.bf16.mxu0 0
    %214 = vmatpush1.bf16.msra.mxu0 %v192
    %215 = vmatprep.subr.bf16.mxu0 0
    %216 = vmatpush1.bf16.msra.mxu0 %v191
    %217 = vmatprep.subr.bf16.mxu0 0
    %218 = vmatpush1.bf16.msra.mxu0 %v190
    %219 = vmatprep.subr.bf16.mxu0 0
    %220 = vmatpush1.bf16.msra.mxu0 %v189
    %221 = vmatprep.subr.bf16.mxu0 0
    %222 = vmatpush2.bf16.msra.mxu0 0
    %223 = vmatprep.subr.bf16.mxu0 0
    %224 = vmatpush2.bf16.msra.mxu0 0
    %225 = vmatprep.subr.bf16.mxu0 0
    %226 = vmatpush2.bf16.msra.mxu0 0
    %227 = vmatprep.subr.bf16.mxu0 0
    %228 = vmatpush2.bf16.msra.mxu0 0
    %229 = vmatprep.subr.bf16.mxu0 0
    %230 = vmatpush2.bf16.msra.mxu0 0
    %231 = vmatprep.subr.bf16.mxu0 0
    %232 = vmatpush2.bf16.msra.mxu0 0
    %233 = vmatprep.subr.bf16.mxu0 0
    %234 = vmatpush2.bf16.msra.mxu0 0
    %235 = vmatprep.subr.bf16.mxu0 0
    %236 = vmatpush2.bf16.msra.mxu0 0
    %237 = vmatprep.mubr.bf16.mxu0 0
    %238 = vmatmul.mubr.bf16.gmra.mxu0 %v141
    %v239 = vpop.f32.mrf.mxu0
    %v240 = vadd.f32 0.0, %v239
    %v241 = vpop.f32.mrf.mxu0
    %v242 = vpop.f32.mrf.mxu0
    %v243 = vadd.f32 0.0, %v242
    %v244 = vpop.f32.mrf.mxu0
    %245 = vmatprep.mubr.bf16.mxu0 0
    %246 = vmatmul.mubr.bf16.gmra.mxu0 %v142
    %v247 = vpop.f32.mrf.mxu0
    %v248 = vadd.f32 0.0, %v247
    %v249 = vpop.f32.mrf.mxu0
    %v250 = vpop.f32.mrf.mxu0
    %v251 = vadd.f32 0.0, %v250
    %v252 = vpop.f32.mrf.mxu0
    %253 = vmatprep.mubr.bf16.mxu0 0
    %254 = vmatmul.mubr.bf16.gmra.mxu0 %v143
    %v255 = vpop.f32.mrf.mxu0
    %v256 = vadd.f32 0.0, %v255
    %v257 = vpop.f32.mrf.mxu0
    %v258 = vpop.f32.mrf.mxu0
    %v259 = vadd.f32 0.0, %v258
    %v260 = vpop.f32.mrf.mxu0
    %261 = vmatprep.mubr.bf16.mxu0 0
    %262 = vmatmul.mubr.bf16.gmra.mxu0 %v144
    %v263 = vpop.f32.mrf.mxu0
    %v264 = vadd.f32 0.0, %v263
    %v265 = vpop.f32.mrf.mxu0
    %v266 = vpop.f32.mrf.mxu0
    %v267 = vadd.f32 0.0, %v266
    %v268 = vpop.f32.mrf.mxu0
    %269 = vmatprep.mubr.bf16.mxu0 0
    %270 = vmatmul.mubr.bf16.gmra.mxu0 %v145
    %v271 = vpop.f32.mrf.mxu0
    %v272 = vadd.f32 0.0, %v271
    %v273 = vpop.f32.mrf.mxu0
    %v274 = vpop.f32.mrf.mxu0
    %v275 = vadd.f32 0.0, %v274
    %v276 = vpop.f32.mrf.mxu0
    %277 = vmatprep.mubr.bf16.mxu0 0
    %278 = vmatmul.mubr.bf16.gmra.mxu0 %v146
    %v279 = vpop.f32.mrf.mxu0
    %v280 = vadd.f32 0.0, %v279
    %v281 = vpop.f32.mrf.mxu0
    %v282 = vpop.f32.mrf.mxu0
    %v283 = vadd.f32 0.0, %v282
    %v284 = vpop.f32.mrf.mxu0
    %285 = vmatprep.mubr.bf16.mxu0 0
    %286 = vmatmul.mubr.bf16.gmra.mxu0 %v147
    %v287 = vpop.f32.mrf.mxu0
    %v288 = vadd.f32 0.0, %v287
    %v289 = vpop.f32.mrf.mxu0
    %v290 = vpop.f32.mrf.mxu0
    %v291 = vadd.f32 0.0, %v290
    %v292 = vpop.f32.mrf.mxu0
    %293 = vmatprep.mubr.bf16.mxu0 0
    %294 = vmatmul.mubr.bf16.gmra.mxu0 %v148
    %v295 = vpop.f32.mrf.mxu0
    %v296 = vadd.f32 0.0, %v295
    %v297 = vpop.f32.mrf.mxu0
    %v298 = vpop.f32.mrf.mxu0
    %v299 = vadd.f32 0.0, %v298
    %v300 = vpop.f32.mrf.mxu0
    %301 = vdwg.mxu0
    %v302 = vadd.f32 %v61, %v240
    %v303 = vadd.f32 %v62, %v243
    %v304 = vadd.f32 %v63, %v248
    %v305 = vadd.f32 %v64, %v251
    %v306 = vadd.f32 %v65, %v256
    %v307 = vadd.f32 %v66, %v259
    %v308 = vadd.f32 %v67, %v264
    %v309 = vadd.f32 %v68, %v267
    %v310 = vadd.f32 %v69, %v272
    %v311 = vadd.f32 %v70, %v275
    %v312 = vadd.f32 %v71, %v280
    %v313 = vadd.f32 %v72, %v283
    %v314 = vadd.f32 %v73, %v288
    %v315 = vadd.f32 %v74, %v291
    %v316 = vadd.f32 %v75, %v296
    %v317 = vadd.f32 %v76, %v299
    %318 = vst [vmem:[#allocation7] sm:$0xff] %v302
    %319 = vst [vmem:[#allocation7 + $0x8] sm:$0xff] %v303
    %320 = vst [vmem:[#allocation7 + $0x10] sm:$0xff] %v304
    %321 = vst [vmem:[#allocation7 + $0x18] sm:$0xff] %v305
    %322 = vst [vmem:[#allocation7 + $0x20] sm:$0xff] %v306
    %323 = vst [vmem:[#allocation7 + $0x28] sm:$0xff] %v307
    %324 = vst [vmem:[#allocation7 + $0x30] sm:$0xff] %v308
    %325 = vst [vmem:[#allocation7 + $0x38] sm:$0xff] %v309
    %326 = vst [vmem:[#allocation7 + $0x40] sm:$0xff] %v310
    %327 = vst [vmem:[#allocation7 + $0x48] sm:$0xff] %v311
    %328 = vst [vmem:[#allocation7 + $0x50] sm:$0xff] %v312
    %329 = vst [vmem:[#allocation7 + $0x58] sm:$0xff] %v313
    %330 = vst [vmem:[#allocation7 + $0x60] sm:$0xff] %v314
    %331 = vst [vmem:[#allocation7 + $0x68] sm:$0xff] %v315
    %332 = vst [vmem:[#allocation7 + $0x70] sm:$0xff] %v316
    %333 = vst [vmem:[#allocation7 + $0x78] sm:$0xff] %v317
    // Predicated region
    $region22: #{tpu_custom_call.1} parent=1 // pred_check
      _
    $region23: #{tpu_custom_call.1} parent=1 // pred_check_branch
      %335 = sbr.rel (0) target = $region25
    $region24: #{tpu_custom_call.1} parent=1 // pred_region
      %s337 = ssub.s32 2048, 2048
      %338 = vsyncadd [#allocation4], %s337
      %s339 = sshll.u32 [#allocation7], 4
      %s340 = int_to_ptr.vmem [resolvable:$true] %s339
      %345 = dma.vmem_to_hbm [thread:$0]  %s340, 2048, %s2, [#allocation4], 128, 128, 8
    $region25: #{tpu_custom_call.1} parent=1 // pred_fallthru
      _
    // Predicated region
    $region26: #{tpu_custom_call.1} parent=1 // pred_check
      _
    $region27: #{tpu_custom_call.1} parent=1 // pred_check_branch
      %347 = sbr.rel (0) target = $region29
    $region28: #{tpu_custom_call.1} parent=1 // pred_region
      %348 = dma.done [#allocation4], 2048
    $region29: #{tpu_custom_call.1} parent=1 // pred_fallthru
      _
    %349 = vsyncpa [#allocation3], 1
    %350 = vsyncpa [#allocation6], 1
    %351 = vsyncpa [#allocation4], 1

</llo_original>
